<compile_context>
chip_gen: v6e
topology: v6e:2x2x1
jax: 0.10.0
libtpu: 0.0.40
codegen_flags: <defaults>
</compile_context>

<pallas_src>
import jax
import jax.numpy as jnp
from jax.experimental import pallas as pl
from jax.experimental.pallas import tpu as pltpu


# --------------------------------------------------------------------------
# Main kernel: gridded over lane tiles of N.
#   cols = [ w1x | b1_eff | b2 | b3(row0) ]                         [40, 4]
#   h1 = relu(w1x * x_row + b1_eff)        (VPU broadcast, no MXU)  [40, Nt]
#   h2 = relu(W2 @ h1 + b2)                (the one real MXU matmul)[40, Nt]
#   o  = W3 @ h2 + b3                      ([1,40] @ [40,Nt])       [1,  Nt]
# --------------------------------------------------------------------------
def _main_kernel(x_ref, cols_ref, w2_ref, w3_ref, o_ref):
    cols = cols_ref[...]                                  # [40, 4]
    w1x = cols[:, 0:1]                                    # [40, 1]
    b1eff = cols[:, 1:2]                                  # [40, 1]
    b2 = cols[:, 2:3]                                     # [40, 1]
    b3 = cols[0:1, 3:4]                                   # [1, 1]

    x = x_ref[...]                                        # [1, Nt]
    h1 = jnp.maximum(w1x * x + b1eff, 0.0)                # [40, Nt]
    h2 = jnp.dot(w2_ref[...], h1,
                 preferred_element_type=jnp.float32) + b2  # [40, Nt]
    h2 = jnp.maximum(h2, 0.0)
    # NOTE: default MXU precision (bf16-decomposed f32) is well within 1e-4 of
    # the PyTorch f32 reference; pass precision=lax.Precision.HIGHEST here if
    # tighter parity is ever required.
    o_ref[...] = jnp.dot(w3_ref[...], h2,
                         preferred_element_type=jnp.float32) + b3  # [1, Nt]


def _round_up(a, b):
    return ((a + b - 1) // b) * b


def prepare_params(params):
    """One-time parameter preprocessing (keeps .T / slicing off the hot path).

    Weights stay in PyTorch's [out, in] layout (transposed compute: W @ H).
    """
    fc1_w = params["fc1_w"]                                # [40, 3]
    H = fc1_w.shape[0]
    b3_col = jnp.broadcast_to(params["fc3_b"][None, :], (H, 1))   # [40, 1]
    return {
        "we1": params["emb1_w"],                           # [50, 2K]
        "be1": params["emb1_b"][:, None],                  # [50, 1]
        "we2": params["emb2_w"],                           # [2, 50]
        "be2": params["emb2_b"][:, None],                  # [2, 1]
        "w1x": fc1_w[:, :1],                               # [40, 1] (x column)
        "w1s": fc1_w[:, 1:],                               # [40, 2] (signal cols)
        "b1":  params["fc1_b"][:, None],                   # [40, 1]
        # Static columns packed once: [ b2 | b3(row0, broadcast) ]  -> [40, 2]
        "b2b3": jnp.concatenate([params["fc2_b"][:, None], b3_col], axis=1),
        "w2":  params["fc2_w"],                            # [40, 40]
        "w3":  params["fc3_w"],                            # [1, 40]
    }


def model_forward(x, meta_x, meta_y, prep, *, tile_n=16384):
    """x: [N, 1], meta_x: [1, K], meta_y: [1, K]  ->  [N, 1]."""
    assert x.ndim == 2 and x.shape[1] == 1, "fc1 split assumes x has 1 feature"
    N = x.shape[0]
    H = prep["w2"].shape[0]                                # 40

    # ---- step 1: effective fc1 bias from the meta example (plain jnp) -------
    # ~600 FLOPs total; XLA fuses it, no kernel launch / HBM round trip.
    meta_col = jnp.concatenate([meta_x, meta_y], axis=1).T             # [2K, 1]
    e1 = jnp.maximum(prep["we1"] @ meta_col + prep["be1"], 0.0)        # [50, 1]
    sig = prep["we2"] @ e1 + prep["be2"]                               # [2, 1]
    b1_eff = prep["w1s"] @ sig + prep["b1"]                            # [40, 1]
    # Pack all lane-width-1 operands into one [40, 4] block:
    #   col 0 = w1x, col 1 = b1_eff, col 2 = b2, col 3 (row 0) = b3.
    cols = jnp.concatenate([prep["w1x"], b1_eff, prep["b2b3"]], axis=1)

    # ---- step 2: tile selection ---------------------------------------------
    # Lane chunks of 128; tile waste is < 128 lanes per tile (never rounds N
    # up to a full tile_n multiple).  Keep >= 2 tiles when there is enough
    # work so ("parallel",) feeds both v7x TensorCores.
    n128 = _round_up(N, 128)
    chunks = n128 // 128
    max_chunks = max(min(tile_n, 32768) // 128, 1)         # cap tile at 32768
    num_tiles = -(-chunks // max_chunks)
    if num_tiles == 1 and chunks >= 2:
        num_tiles = 2
    tile = (-(-chunks // num_tiles)) * 128                 # multiple of 128
    n_pad = num_tiles * tile

    # Per-tile live f32 working set is a few [40, tile] temporaries plus the
    # double-buffered [1, tile] I/O (~700 B/lane with margin).  Request scoped
    # VMEM accordingly; cap keeps us inside v7x's 64 MiB/TC physical VMEM.
    vmem_bytes = int(min(48 * 1024 * 1024, tile * 1024 + (4 << 20)))

    # ---- step 3: lane-dense input row (pad only when N is not 128-aligned) --
    x_row = x.reshape(1, N)
    if n_pad != N:
        x_row = jnp.pad(x_row, ((0, 0), (0, n_pad - N)))   # [1, n_pad]

    const = lambda i: (0, 0)
    out_row = pl.pallas_call(
        _main_kernel,
        out_shape=jax.ShapeDtypeStruct((1, n_pad), jnp.float32),
        grid_spec=pltpu.PrefetchScalarGridSpec(
            num_scalar_prefetch=0,
            grid=(num_tiles,),
            in_specs=[
                pl.BlockSpec((1, tile), lambda i: (0, i)),  # x row tile
                pl.BlockSpec((H, 4), const),                # packed columns
                pl.BlockSpec((H, H), const),                # W2
                pl.BlockSpec((1, H), const),                # W3 row
            ],
            out_specs=pl.BlockSpec((1, tile), lambda i: (0, i)),
        ),
        compiler_params=pltpu.CompilerParams(
            dimension_semantics=("parallel",),
            vmem_limit_bytes=vmem_bytes),
    )(x_row, cols, prep["w2"], prep["w3"])

    if n_pad != N:
        out_row = out_row[:, :N]
    return out_row.reshape(N, 1)


# --------------------------------------------------------------------------
# Test harness
# --------------------------------------------------------------------------
def _init_params(key, K=5):
    ks = jax.random.split(key, 10)

    def lin(kw, kb, out_f, in_f):
        bound = 1.0 / jnp.sqrt(in_f)
        w = jax.random.uniform(kw, (out_f, in_f), jnp.float32, -bound, bound)
        b = jax.random.uniform(kb, (out_f,), jnp.float32, -bound, bound)
        return w, b

    p = {}
    p["emb1_w"], p["emb1_b"] = lin(ks[0], ks[1], 50, 2 * K)
    p["emb2_w"], p["emb2_b"] = lin(ks[2], ks[3], 2, 50)
    p["fc1_w"], p["fc1_b"] = lin(ks[4], ks[5], 40, 3)
    p["fc2_w"], p["fc2_b"] = lin(ks[6], ks[7], 40, 40)
    p["fc3_w"], p["fc3_b"] = lin(ks[8], ks[9], 1, 40)
    return p


def _reference(x, meta_x, meta_y, p):
    meta = jnp.concatenate([meta_x, meta_y], axis=1)
    sig = (jnp.maximum(meta @ p["emb1_w"].T + p["emb1_b"], 0.0)
           @ p["emb2_w"].T + p["emb2_b"])
    h = jnp.concatenate([x, jnp.broadcast_to(sig, (x.shape[0], 2))], axis=1)
    h = jnp.maximum(h @ p["fc1_w"].T + p["fc1_b"], 0.0)
    h = jnp.maximum(h @ p["fc2_w"].T + p["fc2_b"], 0.0)
    return h @ p["fc3_w"].T + p["fc3_b"]


if __name__ == "__main__":
    K = 5
    key = jax.random.PRNGKey(0)
    kp, kx, kmx, kmy, kx2 = jax.random.split(key, 5)

    params = _init_params(kp, K=K)
    prep = prepare_params(params)

    meta_x = jax.random.normal(kmx, (1, K), jnp.float32)
    meta_y = jax.random.normal(kmy, (1, K), jnp.float32)

    # Case 1: small N (single 128-wide tile, lanes padded inside the wrapper).
    x_small = jax.random.normal(kx, (8, 1), jnp.float32)
    out_small = jax.block_until_ready(model_forward(x_small, meta_x, meta_y, prep))
    ref_small = _reference(x_small, meta_x, meta_y, params)
    assert out_small.shape == (8, 1)
    assert jnp.allclose(out_small, ref_small, atol=1e-4, rtol=1e-4)

    # Case 2: N not a multiple of 128, default tile_n -> 2 tiles of 256 lanes
    # (exercises the >=2-tile grid path used for v7x megacore sharding).
    x_big = jax.random.normal(kx2, (300, 1), jnp.float32)
    out_big = jax.block_until_ready(model_forward(x_big, meta_x, meta_y, prep))
    ref_big = _reference(x_big, meta_x, meta_y, params)
    assert out_big.shape == (300, 1)
    assert jnp.allclose(out_big, ref_big, atol=1e-4, rtol=1e-4)

    # Case 3: explicit small tile (tile_n=128 -> 3-step grid, multi-tile path).
    out_big2 = jax.block_until_ready(
        model_forward(x_big, meta_x, meta_y, prep, tile_n=128))
    assert out_big2.shape == (300, 1)
    assert jnp.allclose(out_big2, ref_big, atol=1e-4, rtol=1e-4)

    print("KERNEL_OK")
</pallas_src>

<mosaic_0001>
module attributes {stable_mosaic.version = 11 : i64} {
  func.func @_main_kernel(%arg0: i32, %arg1: memref<1x128xf32, #tpu.memory_space<vmem>>, %arg2: memref<40x4xf32, #tpu.memory_space<vmem>>, %arg3: memref<40x40xf32, #tpu.memory_space<vmem>>, %arg4: memref<1x40xf32, #tpu.memory_space<vmem>>, %arg5: memref<1x128xf32, #tpu.memory_space<vmem>>) attributes {dimension_semantics = [#tpu.dimension_semantics<parallel>], iteration_bounds = array<i64: 1>, scalar_prefetch = 0 : i64, scratch_operands = 0 : i64, tpu.core_type = #tpu.core_type<tc>, window_params = [{transform_indices = @transform_0, window_bounds = array<i64: 1, 128>}, {pipeline_mode = #tpu.pipeline_mode<synchronous>, transform_indices = @transform_1, window_bounds = array<i64: 40, 4>}, {pipeline_mode = #tpu.pipeline_mode<synchronous>, transform_indices = @transform_2, window_bounds = array<i64: 40, 40>}, {pipeline_mode = #tpu.pipeline_mode<synchronous>, transform_indices = @transform_3, window_bounds = array<i64: 1, 40>}, {transform_indices = @transform_4, window_bounds = array<i64: 1, 128>}]} {
    %c0 = arith.constant 0 : index
    %c0_0 = arith.constant 0 : index
    %0 = vector.load %arg2[%c0, %c0_0] : memref<40x4xf32, #tpu.memory_space<vmem>>, vector<40x4xf32>
    %1 = vector.extract_strided_slice %0 {offsets = [0, 0], sizes = [40, 1], strides = [1, 1]} : vector<40x4xf32> to vector<40x1xf32>
    %2 = vector.extract_strided_slice %0 {offsets = [0, 1], sizes = [40, 1], strides = [1, 1]} : vector<40x4xf32> to vector<40x1xf32>
    %3 = vector.extract_strided_slice %0 {offsets = [0, 2], sizes = [40, 1], strides = [1, 1]} : vector<40x4xf32> to vector<40x1xf32>
    %4 = vector.extract_strided_slice %0 {offsets = [0, 3], sizes = [1, 1], strides = [1, 1]} : vector<40x4xf32> to vector<1x1xf32>
    %c0_1 = arith.constant 0 : index
    %c0_2 = arith.constant 0 : index
    %5 = vector.load %arg1[%c0_1, %c0_2] : memref<1x128xf32, #tpu.memory_space<vmem>>, vector<1x128xf32>
    %6 = vector.broadcast %1 : vector<40x1xf32> to vector<40x128xf32>
    %7 = vector.broadcast %5 : vector<1x128xf32> to vector<40x128xf32>
    %8 = arith.mulf %6, %7 : vector<40x128xf32>
    %9 = vector.broadcast %2 : vector<40x1xf32> to vector<40x128xf32>
    %10 = arith.addf %8, %9 : vector<40x128xf32>
    %cst = arith.constant 0.000000e+00 : f32
    %11 = vector.broadcast %cst : f32 to vector<40x128xf32>
    %12 = arith.maximumf %10, %11 : vector<40x128xf32>
    %c0_3 = arith.constant 0 : index
    %c0_4 = arith.constant 0 : index
    %13 = vector.load %arg3[%c0_3, %c0_4] : memref<40x40xf32, #tpu.memory_space<vmem>>, vector<40x40xf32>
    %cst_5 = arith.constant dense<0.000000e+00> : vector<40x128xf32>
    %14 = tpu.matmul %13, %12, %cst_5 {dimension_numbers = #tpu.dot_dimension_numbers<[1], [0], [0], [1], [0, 0, 1, 1], [], []>} : vector<40x40xf32>, vector<40x128xf32>, vector<40x128xf32> -> vector<40x128xf32>
    %15 = vector.broadcast %3 : vector<40x1xf32> to vector<40x128xf32>
    %16 = arith.addf %14, %15 : vector<40x128xf32>
    %cst_6 = arith.constant 0.000000e+00 : f32
    %17 = vector.broadcast %cst_6 : f32 to vector<40x128xf32>
    %18 = arith.maximumf %16, %17 : vector<40x128xf32>
    %c0_7 = arith.constant 0 : index
    %c0_8 = arith.constant 0 : index
    %19 = vector.load %arg4[%c0_7, %c0_8] : memref<1x40xf32, #tpu.memory_space<vmem>>, vector<1x40xf32>
    %cst_9 = arith.constant dense<0.000000e+00> : vector<1x128xf32>
    %20 = tpu.matmul %19, %18, %cst_9 {dimension_numbers = #tpu.dot_dimension_numbers<[1], [0], [0], [1], [0, 0, 1, 1], [], []>} : vector<1x40xf32>, vector<40x128xf32>, vector<1x128xf32> -> vector<1x128xf32>
    %21 = vector.broadcast %4 : vector<1x1xf32> to vector<1x128xf32>
    %22 = arith.addf %20, %21 : vector<1x128xf32>
    %c0_10 = arith.constant 0 : index
    %c0_11 = arith.constant 0 : index
    %23 = vector.load %arg5[%c0_10, %c0_11] : memref<1x128xf32, #tpu.memory_space<vmem>>, vector<1x128xf32>
    tpu.vector_store %arg5[%c0_10, %c0_11], %22 {strides = array<i32>} : memref<1x128xf32, #tpu.memory_space<vmem>>, vector<1x128xf32>,
    return
  }
  func.func @transform_0(%arg0: i32) -> (i32, i32) {
    %c0_i32 = arith.constant 0 : i32
    %c0_i32_0 = arith.constant 0 : i32
    return %c0_i32, %arg0 : i32, i32
  }
  func.func @transform_1(%arg0: i32) -> (i32, i32) {
    %c0_i32 = arith.constant 0 : i32
    %c0_i32_0 = arith.constant 0 : i32
    %c0_i32_1 = arith.constant 0 : i32
    return %c0_i32, %c0_i32_0 : i32, i32
  }
  func.func @transform_2(%arg0: i32) -> (i32, i32) {
    %c0_i32 = arith.constant 0 : i32
    %c0_i32_0 = arith.constant 0 : i32
    %c0_i32_1 = arith.constant 0 : i32
    return %c0_i32, %c0_i32_0 : i32, i32
  }
  func.func @transform_3(%arg0: i32) -> (i32, i32) {
    %c0_i32 = arith.constant 0 : i32
    %c0_i32_0 = arith.constant 0 : i32
    %c0_i32_1 = arith.constant 0 : i32
    return %c0_i32, %c0_i32_0 : i32, i32
  }
  func.func @transform_4(%arg0: i32) -> (i32, i32) {
    %c0_i32 = arith.constant 0 : i32
    %c0_i32_0 = arith.constant 0 : i32
    return %c0_i32, %arg0 : i32, i32
  }
}

</mosaic_0001>

<llo_original>
// kernel: tpu_custom_call.1
$region0: #{tpu_custom_call.1}
  #allocation0 [shape = 'u32[]', space=smem, size = 0x4, offset = 0x4, fixed_abs, tag = 'smem constant byte address 0x4 - core index']
  #allocation1 [shape = 'u32[144,128]{1,0:T(1,128)}', space=vmem, size = 0x12000, scoped, tag = 'internal scratch']
  %s0 = inlined_call_operand.vmem [shape: f32[1,128], index: 0, kind: input, shape index: {}]
  %s1 = inlined_call_operand.vmem [shape: f32[40,4], index: 1, kind: input, shape index: {}]
  %s2 = inlined_call_operand.vmem [shape: f32[40,40], index: 2, kind: input, shape index: {}]
  %s3 = inlined_call_operand.vmem [shape: f32[1,40], index: 3, kind: input, shape index: {}]
  %s4 = inlined_call_operand.hbm [shape: f32[1,128], index: 4, kind: output, shape index: {}]
  %s5 = sld [smem:[#allocation0]]
  $region26: #{tpu_custom_call.1} parent=0
    _
  %s7 = ssub.s32 1, %s5
  %s8 = scalar_select 0, %s7, %s5
  $region1: #{tpu_custom_call.1} parent=0
    #allocation2 [shape = 'u8[512]{0}', space=vmem, size = 0x400, scoped, tag = 'output window, operand 0, single buffered']
    #allocation3 [shape = 's32[1]{0}', space=sflag, size = 0x4, scoped, tag = 'scoped memory for tpu_custom_call.1']
    %9 = vsyncpa [#allocation3], 0
    // Predicated region
    $region2: #{tpu_custom_call.1} parent=1 // pred_check
      _
    $region3: #{tpu_custom_call.1} parent=1 // pred_check_branch
      %11 = sbr.rel (0) target = $region5
    $region4: #{tpu_custom_call.1} parent=1 // pred_region
      _
    $region5: #{tpu_custom_call.1} parent=1 // pred_fallthru
      _
    // Predicated region
    $region6: #{tpu_custom_call.1} parent=1 // pred_check
      _
    $region7: #{tpu_custom_call.1} parent=1 // pred_check_branch
      %13 = sbr.rel (0) target = $region9
    $region8: #{tpu_custom_call.1} parent=1 // pred_region
      _
    $region9: #{tpu_custom_call.1} parent=1 // pred_fallthru
      _
    // Predicated region
    $region10: #{tpu_custom_call.1} parent=1 // pred_check
      _
    $region11: #{tpu_custom_call.1} parent=1 // pred_check_branch
      %15 = sbr.rel (0) target = $region13
    $region12: #{tpu_custom_call.1} parent=1 // pred_region
      _
    $region13: #{tpu_custom_call.1} parent=1 // pred_fallthru
      _
    // Predicated region
    $region14: #{tpu_custom_call.1} parent=1 // pred_check
      _
    $region15: #{tpu_custom_call.1} parent=1 // pred_check_branch
      %17 = sbr.rel (0) target = $region17
    $region16: #{tpu_custom_call.1} parent=1 // pred_region
      _
    $region17: #{tpu_custom_call.1} parent=1 // pred_fallthru
      _
    %v18 = vld [vmem:[%s1] sm:$0xff]
    %v19 = vld [vmem:[%s1 + $0x8] sm:$0xff]
    %v20 = vld [vmem:[%s1 + $0x10] sm:$0xff]
    %v21 = vld [vmem:[%s1 + $0x18] sm:$0xff]
    %v22 = vld [vmem:[%s1 + $0x20] sm:$0xff]
    %v23 = vld [vmem:[%s0] sm:$0x1]
    %25 = vset.pattern.permute.xlu0 0
    %26 = vperm.xlu0 %25, %v18
    %v27 = vpop.permute.xlu0 %26
    %30 = vset.pattern.permute.xlu0 0
    %31 = vperm.xlu0 %30, %v19
    %v32 = vpop.permute.xlu0 %31
    %35 = vset.pattern.permute.xlu0 0
    %36 = vperm.xlu0 %35, %v20
    %v37 = vpop.permute.xlu0 %36
    %40 = vset.pattern.permute.xlu0 0
    %41 = vperm.xlu0 %40, %v21
    %v42 = vpop.permute.xlu0 %41
    %45 = vset.pattern.permute.xlu0 0
    %46 = vperm.xlu0 %45, %v22
    %v47 = vpop.permute.xlu0 %46
    %v50 = vlaneseq
    %v51 = vshrl.u32 %v50, 7
    %v52 = vsub.s32 0, %v51
    %v53 = vrot.slane %v23, %v52
    %v55 = vmul.f32 %v27, %v53
    %v56 = vmul.f32 %v32, %v53
    %v57 = vmul.f32 %v37, %v53
    %v58 = vmul.f32 %v42, %v53
    %v59 = vmul.f32 %v47, %v53
    %60 = vset.pattern.permute.xlu0 1
    %61 = vperm.xlu0 %60, %v18
    %v62 = vpop.permute.xlu0 %61
    %64 = vset.pattern.permute.xlu0 1
    %65 = vperm.xlu0 %64, %v19
    %v66 = vpop.permute.xlu0 %65
    %68 = vset.pattern.permute.xlu0 1
    %69 = vperm.xlu0 %68, %v20
    %v70 = vpop.permute.xlu0 %69
    %72 = vset.pattern.permute.xlu0 1
    %73 = vperm.xlu0 %72, %v21
    %v74 = vpop.permute.xlu0 %73
    %76 = vset.pattern.permute.xlu0 1
    %77 = vperm.xlu0 %76, %v22
    %v78 = vpop.permute.xlu0 %77
    %v80 = vadd.f32 %v55, %v62
    %v81 = vadd.f32 %v56, %v66
    %v82 = vadd.f32 %v57, %v70
    %v83 = vadd.f32 %v58, %v74
    %v84 = vadd.f32 %v59, %v78
    %v85 = vmax.f32 %v80, 0.0
    %v86 = vmax.f32 %v81, 0.0
    %v87 = vmax.f32 %v82, 0.0
    %v88 = vmax.f32 %v83, 0.0
    %v89 = vmax.f32 %v84, 0.0
    %v90 = vld [vmem:[%s2] sm:$0xff]
    %v91 = vld [vmem:[%s2 + $0x8] sm:$0xff]
    %v92 = vld [vmem:[%s2 + $0x10] sm:$0xff]
    %v93 = vld [vmem:[%s2 + $0x18] sm:$0xff]
    %v94 = vld [vmem:[%s2 + $0x20] sm:$0xff]
    %95 = vset.pattern.permute.xlu0 2
    %96 = vperm.xlu0 %95, %v18
    %v97 = vpop.permute.xlu0 %96
    %99 = vset.pattern.permute.xlu0 2
    %100 = vperm.xlu0 %99, %v19
    %v101 = vpop.permute.xlu0 %100
    %103 = vset.pattern.permute.xlu0 2
    %104 = vperm.xlu0 %103, %v20
    %v105 = vpop.permute.xlu0 %104
    %107 = vset.pattern.permute.xlu0 2
    %108 = vperm.xlu0 %107, %v21
    %v109 = vpop.permute.xlu0 %108
    %111 = vset.pattern.permute.xlu0 2
    %112 = vperm.xlu0 %111, %v22
    %v113 = vpop.permute.xlu0 %112
    %vm115 = vcmask 326656
    %v117 = vsel %vm115, %v90, 0
    %v120 = vsel %vm115, %v91, 0
    %v123 = vsel %vm115, %v92, 0
    %v126 = vsel %vm115, %v93, 0
    %v129 = vsel %vm115, %v94, 0
    %131 = vmatprep.subr.mxu0 0.0
    %132 = vmatpush1.msra.mxu0 0.0
    %133 = vmatprep.subr.mxu0 0.0
    %134 = vmatpush1.msra.mxu0 0.0
    %135 = vmatprep.subr.mxu0 0.0
    %136 = vmatpush1.msra.mxu0 0.0
    %137 = vmatprep.subr.mxu0 0.0
    %138 = vmatpush1.msra.mxu0 0.0
    %139 = vmatprep.subr.mxu0 0.0
    %140 = vmatpush1.msra.mxu0 0.0
    %141 = vmatprep.subr.mxu0 0.0
    %142 = vmatpush1.msra.mxu0 0.0
    %143 = vmatprep.subr.mxu0 0.0
    %144 = vmatpush1.msra.mxu0 0.0
    %145 = vmatprep.subr.mxu0 0.0
    %146 = vmatpush1.msra.mxu0 0.0
    %147 = vmatprep.subr.mxu0 0.0
    %148 = vmatpush1.msra.mxu0 0.0
    %149 = vmatprep.subr.mxu0 0.0
    %150 = vmatpush1.msra.mxu0 0.0
    %151 = vmatprep.subr.mxu0 0.0
    %152 = vmatpush1.msra.mxu0 0.0
    %153 = vmatprep.subr.mxu0 0.0
    %154 = vmatpush1.msra.mxu0 %v89
    %155 = vmatprep.subr.mxu0 0.0
    %156 = vmatpush1.msra.mxu0 %v88
    %157 = vmatprep.subr.mxu0 0.0
    %158 = vmatpush1.msra.mxu0 %v87
    %159 = vmatprep.subr.mxu0 0.0
    %160 = vmatpush1.msra.mxu0 %v86
    %161 = vmatprep.subr.mxu0 0.0
    %162 = vmatpush1.msra.mxu0 %v85
    %163 = vmatprep.subr.mxu0 0.0
    %164 = vmatpush2.msra.mxu0 0.0
    %165 = vmatprep.subr.mxu0 0.0
    %166 = vmatpush2.msra.mxu0 0.0
    %167 = vmatprep.subr.mxu0 0.0
    %168 = vmatpush2.msra.mxu0 0.0
    %169 = vmatprep.subr.mxu0 0.0
    %170 = vmatpush2.msra.mxu0 0.0
    %171 = vmatprep.subr.mxu0 0.0
    %172 = vmatpush2.msra.mxu0 0.0
    %173 = vmatprep.subr.mxu0 0.0
    %174 = vmatpush2.msra.mxu0 0.0
    %175 = vmatprep.subr.mxu0 0.0
    %176 = vmatpush2.msra.mxu0 0.0
    %177 = vmatprep.subr.mxu0 0.0
    %178 = vmatpush2.msra.mxu0 0.0
    %179 = vmatprep.subr.mxu0 0.0
    %180 = vmatpush2.msra.mxu0 0.0
    %181 = vmatprep.subr.mxu0 0.0
    %182 = vmatpush2.msra.mxu0 0.0
    %183 = vmatprep.subr.mxu0 0.0
    %184 = vmatpush2.msra.mxu0 0.0
    %185 = vmatprep.subr.mxu0 0.0
    %186 = vmatpush2.msra.mxu0 0.0
    %187 = vmatprep.subr.mxu0 0.0
    %188 = vmatpush2.msra.mxu0 0.0
    %189 = vmatprep.subr.mxu0 0.0
    %190 = vmatpush2.msra.mxu0 0.0
    %191 = vmatprep.subr.mxu0 0.0
    %192 = vmatpush2.msra.mxu0 0.0
    %193 = vmatprep.subr.mxu0 0.0
    %194 = vmatpush2.msra.mxu0 0.0
    %195 = vmatprep.mubr.f32.mxu0 0.0
    %196 = vmatmul.mubr.f32.gmra.mxu0 %v117
    %v197 = vpop.f32.mrf.mxu0
    %v198 = vadd.f32 %v97, %v197
    %v199 = vpop.f32.mrf.mxu0
    %200 = vmatprep.mubr.f32.mxu0 0.0
    %201 = vmatmul.mubr.f32.gmra.mxu0 %v120
    %v202 = vpop.f32.mrf.mxu0
    %v203 = vadd.f32 %v101, %v202
    %v204 = vpop.f32.mrf.mxu0
    %205 = vmatprep.mubr.f32.mxu0 0.0
    %206 = vmatmul.mubr.f32.gmra.mxu0 %v123
    %v207 = vpop.f32.mrf.mxu0
    %v208 = vadd.f32 %v105, %v207
    %v209 = vpop.f32.mrf.mxu0
    %210 = vmatprep.mubr.f32.mxu0 0.0
    %211 = vmatmul.mubr.f32.gmra.mxu0 %v126
    %v212 = vpop.f32.mrf.mxu0
    %v213 = vadd.f32 %v109, %v212
    %v214 = vpop.f32.mrf.mxu0
    %215 = vmatprep.mubr.f32.mxu0 0.0
    %216 = vmatmul.mubr.f32.gmra.mxu0 %v129
    %v217 = vpop.f32.mrf.mxu0
    %v218 = vadd.f32 %v113, %v217
    %v219 = vpop.f32.mrf.mxu0
    %220 = vdwg.mxu0
    %v221 = vmax.f32 %v198, 0.0
    %v222 = vmax.f32 %v203, 0.0
    %v223 = vmax.f32 %v208, 0.0
    %v224 = vmax.f32 %v213, 0.0
    %v225 = vmax.f32 %v218, 0.0
    %v226 = vld [vmem:[%s3] sm:$0x1]
    %227 = vset.pattern.permute.xlu0 3
    %228 = vperm.xlu0 %227, %v18
    %v229 = vpop.permute.xlu0 %228
    %v232 = vsel %vm115, %v226, 0
    %234 = vmatprep.subr.mxu0 0.0
    %235 = vmatpush1.msra.mxu0 0.0
    %236 = vmatprep.subr.mxu0 0.0
    %237 = vmatpush1.msra.mxu0 0.0
    %238 = vmatprep.subr.mxu0 0.0
    %239 = vmatpush1.msra.mxu0 0.0
    %240 = vmatprep.subr.mxu0 0.0
    %241 = vmatpush1.msra.mxu0 0.0
    %242 = vmatprep.subr.mxu0 0.0
    %243 = vmatpush1.msra.mxu0 0.0
    %244 = vmatprep.subr.mxu0 0.0
    %245 = vmatpush1.msra.mxu0 0.0
    %246 = vmatprep.subr.mxu0 0.0
    %247 = vmatpush1.msra.mxu0 0.0
    %248 = vmatprep.subr.mxu0 0.0
    %249 = vmatpush1.msra.mxu0 0.0
    %250 = vmatprep.subr.mxu0 0.0
    %251 = vmatpush1.msra.mxu0 0.0
    %252 = vmatprep.subr.mxu0 0.0
    %253 = vmatpush1.msra.mxu0 0.0
    %254 = vmatprep.subr.mxu0 0.0
    %255 = vmatpush1.msra.mxu0 0.0
    %256 = vmatprep.subr.mxu0 0.0
    %257 = vmatpush1.msra.mxu0 %v225
    %258 = vmatprep.subr.mxu0 0.0
    %259 = vmatpush1.msra.mxu0 %v224
    %260 = vmatprep.subr.mxu0 0.0
    %261 = vmatpush1.msra.mxu0 %v223
    %262 = vmatprep.subr.mxu0 0.0
    %263 = vmatpush1.msra.mxu0 %v222
    %264 = vmatprep.subr.mxu0 0.0
    %265 = vmatpush1.msra.mxu0 %v221
    %266 = vmatprep.subr.mxu0 0.0
    %267 = vmatpush2.msra.mxu0 0.0
    %268 = vmatprep.subr.mxu0 0.0
    %269 = vmatpush2.msra.mxu0 0.0
    %270 = vmatprep.subr.mxu0 0.0
    %271 = vmatpush2.msra.mxu0 0.0
    %272 = vmatprep.subr.mxu0 0.0
    %273 = vmatpush2.msra.mxu0 0.0
    %274 = vmatprep.subr.mxu0 0.0
    %275 = vmatpush2.msra.mxu0 0.0
    %276 = vmatprep.subr.mxu0 0.0
    %277 = vmatpush2.msra.mxu0 0.0
    %278 = vmatprep.subr.mxu0 0.0
    %279 = vmatpush2.msra.mxu0 0.0
    %280 = vmatprep.subr.mxu0 0.0
    %281 = vmatpush2.msra.mxu0 0.0
    %282 = vmatprep.subr.mxu0 0.0
    %283 = vmatpush2.msra.mxu0 0.0
    %284 = vmatprep.subr.mxu0 0.0
    %285 = vmatpush2.msra.mxu0 0.0
    %286 = vmatprep.subr.mxu0 0.0
    %287 = vmatpush2.msra.mxu0 0.0
    %288 = vmatprep.subr.mxu0 0.0
    %289 = vmatpush2.msra.mxu0 0.0
    %290 = vmatprep.subr.mxu0 0.0
    %291 = vmatpush2.msra.mxu0 0.0
    %292 = vmatprep.subr.mxu0 0.0
    %293 = vmatpush2.msra.mxu0 0.0
    %294 = vmatprep.subr.mxu0 0.0
    %295 = vmatpush2.msra.mxu0 0.0
    %296 = vmatprep.subr.mxu0 0.0
    %297 = vmatpush2.msra.mxu0 0.0
    %298 = vmatprep.mubr.f32.mxu0 0.0
    %299 = vmatmul.mubr.f32.gmra.mxu0 %v232
    %v300 = vpop.f32.mrf.mxu0
    %v301 = vadd.f32 %v229, %v300
    %v302 = vpop.f32.mrf.mxu0
    %303 = vdwg.mxu0
    %304 = vst [vmem:[#allocation2] sm:$0x1] %v301
    // Predicated region
    $region18: #{tpu_custom_call.1} parent=1 // pred_check
      _
    $region19: #{tpu_custom_call.1} parent=1 // pred_check_branch
      %306 = sbr.rel (0) target = $region21
    $region20: #{tpu_custom_call.1} parent=1 // pred_region
      %s308 = ssub.s32 16, 16
      %309 = vsyncadd [#allocation3], %s308
      %s311 = sshll.u32 [#allocation2], 4
      %s312 = int_to_ptr.vmem [resolvable:$true] %s311
      %314 = dma.vmem_to_hbm [thread:$0]  %s312, 16, %s4, [#allocation3]
    $region21: #{tpu_custom_call.1} parent=1 // pred_fallthru
      _
    // Predicated region
    $region22: #{tpu_custom_call.1} parent=1 // pred_check
      _
    $region23: #{tpu_custom_call.1} parent=1 // pred_check_branch
      %316 = sbr.rel (0) target = $region25
    $region24: #{tpu_custom_call.1} parent=1 // pred_region
      %317 = dma.done [#allocation3], 16
    $region25: #{tpu_custom_call.1} parent=1 // pred_fallthru
      _
    %318 = vsyncpa [#allocation3], 1

</llo_original>
